<compile_context>
chip_gen: v7x
topology: tpu7x:2x2x1
jax: 0.10.0
libtpu: 0.0.40
codegen_flags: <defaults>
</compile_context>

<pallas_src>
import jax
import jax.numpy as jnp
from jax.experimental import pallas as pl
from jax.experimental.pallas import tpu as pltpu


# ----------------------------- feature classes ------------------------------
class SparseFeature:
    def __init__(self, name, vocab_size, embed_dim, shared_with=None, padding_idx=None):
        self.name = name
        self.vocab_size = vocab_size
        self.embed_dim = embed_dim
        self.shared_with = shared_with
        self.padding_idx = padding_idx


class SequenceFeature:
    def __init__(self, name, vocab_size, embed_dim, pooling="mean",
                 shared_with=None, padding_idx=None):
        self.name = name
        self.vocab_size = vocab_size
        self.embed_dim = embed_dim
        self.pooling = pooling
        self.shared_with = shared_with
        self.padding_idx = padding_idx


class DenseFeature:
    def __init__(self, name):
        self.name = name


# ------------------------------ helpers --------------------------------------
def _round_up(x, m):
    return ((x + m - 1) // m) * m


def _choose_batch_tile(B):
    """Per-step batch tile.

    Big tiles amortize the ~0.35us/step grid overhead; for B > 8 the tile stays at
    <= ~ceil(B/2) so the grid has >=2 steps and v7x's two TensorCores both get work.
    For B <= 8 the full dim is used (block == array dim is always a legal block shape).
    """
    if B <= 8:
        return B
    return max(8, min(256, _round_up((B + 1) // 2, 8)))


def _vmem_capacity_bytes():
    # Generation-aware budget (v7x has 64 MiB/TC vs 128 MiB on v5e/v6e).
    try:
        return int(pltpu.get_tpu_info().vmem_capacity_bytes)
    except Exception:
        return 64 << 20  # conservative (v7x) fallback


# ----------------------------- fused Pallas kernel ---------------------------
def fused_embedding_forward(tables, plan, idx_arrays, dense_mat=None):
    """Fused embedding lookup + sum/mean pooling + concat.

    tables:      list of (V_i, D_i) float32 arrays.
    plan:        list of dicts, in output order:
                   {"kind": "sparse", "table_slot": i}
                   {"kind": "seq", "table_slot": i, "padding_idx": p, "pooling": "sum"|"mean"}
    idx_arrays:  list of int32 arrays, (B, 1) for sparse, (B, S) for sequence.
    dense_mat:   optional (B, n_dense) float32 appended to the output slab.

    Returns (B, sum(D_i) + n_dense) float32.
    """
    B = int(idx_arrays[0].shape[0])
    n_dense = 0 if dense_mat is None else int(dense_mat.shape[1])
    include_dense = dense_mat is not None

    # ---- static layout of the fused problem ----------------------------------
    feats = []
    v_off = d_off = c_off = 0
    n_mean = 0
    for k, item in enumerate(plan):
        T = tables[item["table_slot"]]
        V, D = int(T.shape[0]), int(T.shape[1])
        ncols = int(idx_arrays[k].shape[1])
        mean_slot = -1
        if item["kind"] == "seq" and item["pooling"] == "mean":
            mean_slot = n_mean
            n_mean += 1
        feats.append(dict(kind=item["kind"], table_slot=item["table_slot"],
                          V=V, D=D, v_off=v_off, d_off=d_off, c_off=c_off,
                          ncols=ncols, padding_idx=item.get("padding_idx", -1),
                          mean_slot=mean_slot))
        v_off += V
        d_off += D
        c_off += ncols
    sum_v, sum_d, tot_cols = v_off, d_off, c_off
    v_max = max(f["V"] for f in feats)
    tbl_cols = sum_d + n_mean            # embeddings + one count column per mean feature
    out_cols = sum_d + n_dense

    # ---- block-diagonal stacked table (bf16) ----------------------------------
    # A single (TB, sum_v) @ (sum_v, tbl_cols) matmul performs every lookup, every
    # pooling sum and (via the trailing ones-columns) every mean-pooling count.
    # Shared tables are duplicated per output feature to keep it block-diagonal.
    big = jnp.zeros((sum_v, tbl_cols), jnp.float32)
    for f in feats:
        T = tables[f["table_slot"]].astype(jnp.float32)
        big = big.at[f["v_off"]:f["v_off"] + f["V"],
                     f["d_off"]:f["d_off"] + f["D"]].set(T)
        if f["mean_slot"] >= 0:
            big = big.at[f["v_off"]:f["v_off"] + f["V"], sum_d + f["mean_slot"]].set(1.0)
    big = big.astype(jnp.bfloat16)       # 0/1 weights + tables in bf16 -> single-pass MXU

    # ---- one packed lane-dense int32 index stream (one DMA per grid step) -----
    idx_packed = jnp.concatenate(
        [a.astype(jnp.int32).reshape(B, -1) for a in idx_arrays], axis=1)

    # ---- batch tiling & VMEM budget --------------------------------------------
    TB = _choose_batch_tile(B)
    nsteps = -(-B // TB)

    table_bytes = int(big.size) * 2
    per_step = (TB * tot_cols * 4        # packed index block
                + TB * out_cols * 4      # output block
                + TB * n_dense * 4)      # dense block
    scratch_bytes = TB * sum_v * 4       # one-hot slab scratch
    need = 2 * (table_bytes + per_step) + scratch_bytes   # double-buffered blocks
    phys_vmem = _vmem_capacity_bytes()
    if need > (phys_vmem * 3) // 4:
        # TODO(synk): large-vocab path — keep the stacked table in HBM
        # (memory_space=pl.ANY) and do a manual deep-prefetch DMA gather per tile.
        raise NotImplementedError("embedding tables too large for the VMEM-resident path")
    vmem_limit = int(min((phys_vmem * 3) // 4, max(32 << 20, 2 * need)))

    # ---- kernel -----------------------------------------------------------------
    def kernel(*refs):
        tbl_ref, idx_ref = refs[0], refs[1]
        dense_ref = refs[2] if include_dense else None
        out_ref = refs[3] if include_dense else refs[2]
        w_ref = refs[-1]                                     # (TB, sum_v) f32 scratch

        idx_all = idx_ref[...]                               # (TB, tot_cols) int32
        # Hoisted iota (JAX does not CSE broadcast_in_dim); sliced per feature.
        iota = jax.lax.broadcasted_iota(jnp.int32, (TB, v_max), 1)

        # Build every feature's one-hot / pooled-one-hot weights into one slab.
        for f in feats:
            V = f["V"]
            iv = iota[:, :V] if V < v_max else iota
            ids = idx_all[:, f["c_off"]:f["c_off"] + f["ncols"]]   # (TB, 1|S) int32
            if f["kind"] == "sparse":
                wk = (ids == iv).astype(jnp.float32)               # (TB, V) one-hot
            else:
                S = f["ncols"]
                wk = (ids[:, 0:1] == iv).astype(jnp.float32)
                for s in range(1, S):                              # S is small & static
                    wk = wk + (ids[:, s:s + 1] == iv).astype(jnp.float32)
                pad = f["padding_idx"]
                if pad is not None and 0 <= pad < V:
                    # Zero the padding column once (replaces S per-position mask muls).
                    wk = wk * (iv != pad).astype(jnp.float32)
            w_ref[:, f["v_off"]:f["v_off"] + V] = wk

        # ONE bf16 MXU matmul: every lookup + pooling sum + mean count at once.
        res = jnp.dot(w_ref[...].astype(jnp.bfloat16), tbl_ref[...],
                      preferred_element_type=jnp.float32)    # (TB, sum_d + n_mean)

        if n_mean > 0:
            cnt = res[:, sum_d:sum_d + n_mean]               # (TB, n_mean) exact integers
            inv = 1.0 / (cnt + 1e-16)                        # matches reference epsilon
            dcol = jax.lax.broadcasted_iota(jnp.int32, (TB, sum_d), 1)
            scale = jnp.ones((TB, sum_d), jnp.float32)
            for f in feats:
                if f["mean_slot"] < 0:
                    continue
                sel = (dcol >= f["d_off"]) & (dcol < f["d_off"] + f["D"])
                invb = jnp.broadcast_to(inv[:, f["mean_slot"]:f["mean_slot"] + 1],
                                        (TB, sum_d))
                scale = jnp.where(sel, invb, scale)
            emb = res[:, :sum_d] * scale
        else:
            emb = res if tbl_cols == sum_d else res[:, :sum_d]

        out_ref[:, :sum_d] = emb                             # single wide store
        if include_dense:
            out_ref[:, sum_d:sum_d + n_dense] = dense_ref[...]

    # ---- pallas_call -------------------------------------------------------------
    inputs = [big, idx_packed]
    in_specs = [
        # Stacked table: constant index_map -> VMEM-resident across the whole grid.
        pl.BlockSpec((sum_v, tbl_cols), lambda b: (0, 0)),
        pl.BlockSpec((TB, tot_cols), lambda b: (b, 0)),
    ]
    if include_dense:
        inputs.append(dense_mat.astype(jnp.float32))
        in_specs.append(pl.BlockSpec((TB, n_dense), lambda b: (b, 0)))

    out = pl.pallas_call(
        kernel,
        out_shape=jax.ShapeDtypeStruct((B, out_cols), jnp.float32),
        grid_spec=pltpu.PrefetchScalarGridSpec(
            num_scalar_prefetch=0,
            grid=(nsteps,),
            in_specs=in_specs,
            out_specs=pl.BlockSpec((TB, out_cols), lambda b: (b, 0)),
            scratch_shapes=[pltpu.VMEM((TB, sum_v), jnp.float32)],
        ),
        compiler_params=pltpu.CompilerParams(
            dimension_semantics=("parallel",),
            vmem_limit_bytes=vmem_limit,
        ),
    )(*inputs)
    return out


# ----------------------------- EmbeddingLayer -------------------------------
class EmbeddingLayer:
    """JAX/Pallas re-implementation of the PyTorch EmbeddingLayer forward pass."""

    def __init__(self, features, key):
        self.features = features
        self.tables = {}
        self.n_dense = 0
        for fea in features:
            if isinstance(fea, (SparseFeature, SequenceFeature)):
                if fea.shared_with is None and fea.name not in self.tables:
                    key, sub = jax.random.split(key)
                    self.tables[fea.name] = (
                        jax.random.normal(sub, (fea.vocab_size, fea.embed_dim),
                                          dtype=jnp.float32) * 0.1)
            elif isinstance(fea, DenseFeature):
                self.n_dense += 1

    def __call__(self, x, features, squeeze_dim=False):
        sparse_like = [f for f in features if isinstance(f, (SparseFeature, SequenceFeature))]
        dense_feats = [f for f in features if isinstance(f, DenseFeature)]

        if not sparse_like:
            if squeeze_dim and dense_feats:
                return jnp.stack([x[f.name].astype(jnp.float32) for f in dense_feats], axis=1)
            raise ValueError("The input features can not be empty / expected SparseFeatures")

        # Unique embedding tables (shared_with collapses onto the owner's table).
        table_names, table_slot = [], {}
        for fea in sparse_like:
            name = fea.shared_with or fea.name
            if name not in table_slot:
                table_slot[name] = len(table_names)
                table_names.append(name)
        tables = [self.tables[n] for n in table_names]

        plan, idx_arrays = [], []
        for fea in sparse_like:
            name = fea.shared_with or fea.name
            if isinstance(fea, SparseFeature):
                plan.append({"kind": "sparse", "table_slot": table_slot[name]})
                idx_arrays.append(x[fea.name].astype(jnp.int32).reshape(-1, 1))
            else:
                if fea.pooling not in ("sum", "mean"):
                    # TODO(synk): "concat" pooling (keep (B, S, D) shape) not wired into the fused kernel.
                    raise ValueError("unsupported pooling %s" % fea.pooling)
                pad = fea.padding_idx if fea.padding_idx is not None else -1
                plan.append({"kind": "seq", "table_slot": table_slot[name],
                             "padding_idx": pad, "pooling": fea.pooling})
                idx_arrays.append(x[fea.name].astype(jnp.int32))

        dense_mat = None
        if squeeze_dim and dense_feats:
            dense_mat = jnp.stack([x[f.name].astype(jnp.float32) for f in dense_feats], axis=1)

        out = fused_embedding_forward(tables, plan, idx_arrays, dense_mat)

        if squeeze_dim:
            return out                                    # (B, F*D [+ n_dense])
        B = idx_arrays[0].shape[0]
        D = sparse_like[0].embed_dim
        return out.reshape(B, len(sparse_like), D)        # (B, F, D), dense ignored


# ----------------------------- pure-JAX reference ---------------------------
def ref_forward(tables, x, features):
    sparse_emb, dense_values = [], []
    for fea in features:
        if isinstance(fea, SparseFeature):
            t = tables[fea.shared_with or fea.name]
            sparse_emb.append(t[x[fea.name]][:, None, :])
        elif isinstance(fea, SequenceFeature):
            t = tables[fea.shared_with or fea.name]
            emb = t[x[fea.name]]                                     # (B, S, D)
            pad = fea.padding_idx if fea.padding_idx is not None else -1
            mask = (x[fea.name] != pad).astype(jnp.float32)          # (B, S)
            summed = jnp.sum(emb * mask[:, :, None], axis=1)
            if fea.pooling == "sum":
                pooled = summed
            else:
                pooled = summed / (mask.sum(-1, keepdims=True) + 1e-16)
            sparse_emb.append(pooled[:, None, :])
        else:
            dense_values.append(x[fea.name].astype(jnp.float32)[:, None])
    sp = jnp.concatenate(sparse_emb, axis=1)
    out = sp.reshape(sp.shape[0], -1)
    if dense_values:
        out = jnp.concatenate([out, jnp.concatenate(dense_values, axis=1)], axis=1)
    return out


# ----------------------------------- main ------------------------------------
if __name__ == "__main__":
    B, S, D = 4, 8, 16
    features = [
        SparseFeature("user_id", vocab_size=32, embed_dim=D),
        SparseFeature("item_id", vocab_size=64, embed_dim=D),
        SequenceFeature("hist_item", vocab_size=64, embed_dim=D, pooling="mean",
                        padding_idx=0, shared_with="item_id"),
        SequenceFeature("tags", vocab_size=32, embed_dim=D, pooling="sum",
                        padding_idx=0),
        DenseFeature("price"),
    ]

    key = jax.random.PRNGKey(0)
    k_layer, k1, k2, k3, k4, k5 = jax.random.split(key, 6)
    layer = EmbeddingLayer(features, k_layer)
    # Test-side: snap table values to bf16-representable floats so the correctness check
    # is independent of the bf16 table cast used by the MXU gather matmul.
    layer.tables = {k: v.astype(jnp.bfloat16).astype(jnp.float32)
                    for k, v in layer.tables.items()}

    x = {
        "user_id": jax.random.randint(k1, (B,), 0, 32, dtype=jnp.int32),
        "item_id": jax.random.randint(k2, (B,), 0, 64, dtype=jnp.int32),
        # sequence features: random ids, some positions set to padding_idx=0
        "hist_item": jax.random.randint(k3, (B, S), 0, 64, dtype=jnp.int32)
                     * (jax.random.uniform(k3, (B, S)) > 0.3).astype(jnp.int32),
        "tags": jax.random.randint(k4, (B, S), 0, 32, dtype=jnp.int32)
                * (jax.random.uniform(k4, (B, S)) > 0.3).astype(jnp.int32),
        "price": jax.random.uniform(k5, (B,), dtype=jnp.float32),
    }

    ref = ref_forward(layer.tables, x, features)

    # squeeze_dim=True: (B, F*D + n_dense) fused slab.
    out = layer(x, features, squeeze_dim=True)
    out = jax.block_until_ready(out)
    assert out.shape == (B, 4 * D + 1), out.shape
    assert jnp.allclose(out, ref, atol=1e-4, rtol=1e-4), "squeeze_dim=True mismatch vs reference"

    # squeeze_dim=False: (B, F, D) sparse slab only (dense ignored, as in torch).
    out_ns = layer(x, features, squeeze_dim=False)
    out_ns = jax.block_until_ready(out_ns)
    assert out_ns.shape == (B, 4, D), out_ns.shape
    assert jnp.allclose(out_ns, ref[:, :4 * D].reshape(B, 4, D), atol=1e-4, rtol=1e-4), \
        "squeeze_dim=False mismatch vs reference"

    print("KERNEL_OK")
</pallas_src>

<mosaic_0001>
module attributes {stable_mosaic.version = 11 : i64} {
  func.func @kernel(%arg0: i32, %arg1: memref<192x65xbf16, #tpu.memory_space<vmem>>, %arg2: memref<4x18xi32, #tpu.memory_space<vmem>>, %arg3: memref<4x1xf32, #tpu.memory_space<vmem>>, %arg4: memref<4x65xf32, #tpu.memory_space<vmem>>, %arg5: memref<4x192xf32, #tpu.memory_space<vmem>>) attributes {dimension_semantics = [#tpu.dimension_semantics<parallel>], iteration_bounds = array<i64: 1>, scalar_prefetch = 0 : i64, scratch_operands = 1 : i64, tpu.core_type = #tpu.core_type<tc>, window_params = [{pipeline_mode = #tpu.pipeline_mode<synchronous>, transform_indices = @transform_0, window_bounds = array<i64: 192, 65>}, {transform_indices = @transform_1, window_bounds = array<i64: 4, 18>}, {transform_indices = @transform_2, window_bounds = array<i64: 4, 1>}, {transform_indices = @transform_3, window_bounds = array<i64: 4, 65>}]} {
    %c0 = arith.constant 0 : index
    %c0_0 = arith.constant 0 : index
    %0 = vector.load %arg2[%c0, %c0_0] : memref<4x18xi32, #tpu.memory_space<vmem>>, vector<4x18xi32>
    %1 = tpu.iota {dimensions = array<i32: 1>} : vector<4x64xi32>
    %2 = vector.extract_strided_slice %1 {offsets = [0, 0], sizes = [4, 32], strides = [1, 1]} : vector<4x64xi32> to vector<4x32xi32>
    %3 = vector.extract_strided_slice %0 {offsets = [0, 0], sizes = [4, 1], strides = [1, 1]} : vector<4x18xi32> to vector<4x1xi32>
    %4 = vector.broadcast %3 : vector<4x1xi32> to vector<4x32xi32>
    %5 = arith.cmpi eq, %4, %2 : vector<4x32xi32>
    %6 = arith.extui %5 : vector<4x32xi1> to vector<4x32xi32>
    %7 = arith.sitofp %6 : vector<4x32xi32> to vector<4x32xf32>
    %c0_1 = arith.constant 0 : index
    %c0_2 = arith.constant 0 : index
    %8 = vector.load %arg5[%c0_1, %c0_2] : memref<4x192xf32, #tpu.memory_space<vmem>>, vector<4x32xf32>
    tpu.vector_store %arg5[%c0_1, %c0_2], %7 {strides = array<i32>} : memref<4x192xf32, #tpu.memory_space<vmem>>, vector<4x32xf32>,
    %9 = vector.extract_strided_slice %0 {offsets = [0, 1], sizes = [4, 1], strides = [1, 1]} : vector<4x18xi32> to vector<4x1xi32>
    %10 = vector.broadcast %9 : vector<4x1xi32> to vector<4x64xi32>
    %11 = arith.cmpi eq, %10, %1 : vector<4x64xi32>
    %12 = arith.extui %11 : vector<4x64xi1> to vector<4x64xi32>
    %13 = arith.sitofp %12 : vector<4x64xi32> to vector<4x64xf32>
    %c0_3 = arith.constant 0 : index
    %c32 = arith.constant 32 : index
    %14 = vector.load %arg5[%c0_3, %c32] : memref<4x192xf32, #tpu.memory_space<vmem>>, vector<4x64xf32>
    tpu.vector_store %arg5[%c0_3, %c32], %13 {strides = array<i32>} : memref<4x192xf32, #tpu.memory_space<vmem>>, vector<4x64xf32>,
    %15 = vector.extract_strided_slice %0 {offsets = [0, 2], sizes = [4, 8], strides = [1, 1]} : vector<4x18xi32> to vector<4x8xi32>
    %16 = vector.extract_strided_slice %15 {offsets = [0, 0], sizes = [4, 1], strides = [1, 1]} : vector<4x8xi32> to vector<4x1xi32>
    %17 = vector.broadcast %16 : vector<4x1xi32> to vector<4x64xi32>
    %18 = arith.cmpi eq, %17, %1 : vector<4x64xi32>
    %19 = arith.extui %18 : vector<4x64xi1> to vector<4x64xi32>
    %20 = arith.sitofp %19 : vector<4x64xi32> to vector<4x64xf32>
    %21 = vector.extract_strided_slice %15 {offsets = [0, 1], sizes = [4, 1], strides = [1, 1]} : vector<4x8xi32> to vector<4x1xi32>
    %22 = vector.broadcast %21 : vector<4x1xi32> to vector<4x64xi32>
    %23 = arith.cmpi eq, %22, %1 : vector<4x64xi32>
    %24 = arith.extui %23 : vector<4x64xi1> to vector<4x64xi32>
    %25 = arith.sitofp %24 : vector<4x64xi32> to vector<4x64xf32>
    %26 = arith.addf %20, %25 : vector<4x64xf32>
    %27 = vector.extract_strided_slice %15 {offsets = [0, 2], sizes = [4, 1], strides = [1, 1]} : vector<4x8xi32> to vector<4x1xi32>
    %28 = vector.broadcast %27 : vector<4x1xi32> to vector<4x64xi32>
    %29 = arith.cmpi eq, %28, %1 : vector<4x64xi32>
    %30 = arith.extui %29 : vector<4x64xi1> to vector<4x64xi32>
    %31 = arith.sitofp %30 : vector<4x64xi32> to vector<4x64xf32>
    %32 = arith.addf %26, %31 : vector<4x64xf32>
    %33 = vector.extract_strided_slice %15 {offsets = [0, 3], sizes = [4, 1], strides = [1, 1]} : vector<4x8xi32> to vector<4x1xi32>
    %34 = vector.broadcast %33 : vector<4x1xi32> to vector<4x64xi32>
    %35 = arith.cmpi eq, %34, %1 : vector<4x64xi32>
    %36 = arith.extui %35 : vector<4x64xi1> to vector<4x64xi32>
    %37 = arith.sitofp %36 : vector<4x64xi32> to vector<4x64xf32>
    %38 = arith.addf %32, %37 : vector<4x64xf32>
    %39 = vector.extract_strided_slice %15 {offsets = [0, 4], sizes = [4, 1], strides = [1, 1]} : vector<4x8xi32> to vector<4x1xi32>
    %40 = vector.broadcast %39 : vector<4x1xi32> to vector<4x64xi32>
    %41 = arith.cmpi eq, %40, %1 : vector<4x64xi32>
    %42 = arith.extui %41 : vector<4x64xi1> to vector<4x64xi32>
    %43 = arith.sitofp %42 : vector<4x64xi32> to vector<4x64xf32>
    %44 = arith.addf %38, %43 : vector<4x64xf32>
    %45 = vector.extract_strided_slice %15 {offsets = [0, 5], sizes = [4, 1], strides = [1, 1]} : vector<4x8xi32> to vector<4x1xi32>
    %46 = vector.broadcast %45 : vector<4x1xi32> to vector<4x64xi32>
    %47 = arith.cmpi eq, %46, %1 : vector<4x64xi32>
    %48 = arith.extui %47 : vector<4x64xi1> to vector<4x64xi32>
    %49 = arith.sitofp %48 : vector<4x64xi32> to vector<4x64xf32>
    %50 = arith.addf %44, %49 : vector<4x64xf32>
    %51 = vector.extract_strided_slice %15 {offsets = [0, 6], sizes = [4, 1], strides = [1, 1]} : vector<4x8xi32> to vector<4x1xi32>
    %52 = vector.broadcast %51 : vector<4x1xi32> to vector<4x64xi32>
    %53 = arith.cmpi eq, %52, %1 : vector<4x64xi32>
    %54 = arith.extui %53 : vector<4x64xi1> to vector<4x64xi32>
    %55 = arith.sitofp %54 : vector<4x64xi32> to vector<4x64xf32>
    %56 = arith.addf %50, %55 : vector<4x64xf32>
    %57 = vector.extract_strided_slice %15 {offsets = [0, 7], sizes = [4, 1], strides = [1, 1]} : vector<4x8xi32> to vector<4x1xi32>
    %58 = vector.broadcast %57 : vector<4x1xi32> to vector<4x64xi32>
    %59 = arith.cmpi eq, %58, %1 : vector<4x64xi32>
    %60 = arith.extui %59 : vector<4x64xi1> to vector<4x64xi32>
    %61 = arith.sitofp %60 : vector<4x64xi32> to vector<4x64xf32>
    %62 = arith.addf %56, %61 : vector<4x64xf32>
    %c0_i32 = arith.constant 0 : i32
    %63 = vector.broadcast %c0_i32 : i32 to vector<4x64xi32>
    %64 = arith.cmpi ne, %1, %63 : vector<4x64xi32>
    %65 = arith.extui %64 : vector<4x64xi1> to vector<4x64xi32>
    %66 = arith.sitofp %65 : vector<4x64xi32> to vector<4x64xf32>
    %67 = arith.mulf %62, %66 : vector<4x64xf32>
    %c0_4 = arith.constant 0 : index
    %c96 = arith.constant 96 : index
    %68 = vector.load %arg5[%c0_4, %c96] : memref<4x192xf32, #tpu.memory_space<vmem>>, vector<4x64xf32>
    tpu.vector_store %arg5[%c0_4, %c96], %67 {strides = array<i32>} : memref<4x192xf32, #tpu.memory_space<vmem>>, vector<4x64xf32>,
    %69 = vector.extract_strided_slice %1 {offsets = [0, 0], sizes = [4, 32], strides = [1, 1]} : vector<4x64xi32> to vector<4x32xi32>
    %70 = vector.extract_strided_slice %0 {offsets = [0, 10], sizes = [4, 8], strides = [1, 1]} : vector<4x18xi32> to vector<4x8xi32>
    %71 = vector.extract_strided_slice %70 {offsets = [0, 0], sizes = [4, 1], strides = [1, 1]} : vector<4x8xi32> to vector<4x1xi32>
    %72 = vector.broadcast %71 : vector<4x1xi32> to vector<4x32xi32>
    %73 = arith.cmpi eq, %72, %69 : vector<4x32xi32>
    %74 = arith.extui %73 : vector<4x32xi1> to vector<4x32xi32>
    %75 = arith.sitofp %74 : vector<4x32xi32> to vector<4x32xf32>
    %76 = vector.extract_strided_slice %70 {offsets = [0, 1], sizes = [4, 1], strides = [1, 1]} : vector<4x8xi32> to vector<4x1xi32>
    %77 = vector.broadcast %76 : vector<4x1xi32> to vector<4x32xi32>
    %78 = arith.cmpi eq, %77, %69 : vector<4x32xi32>
    %79 = arith.extui %78 : vector<4x32xi1> to vector<4x32xi32>
    %80 = arith.sitofp %79 : vector<4x32xi32> to vector<4x32xf32>
    %81 = arith.addf %75, %80 : vector<4x32xf32>
    %82 = vector.extract_strided_slice %70 {offsets = [0, 2], sizes = [4, 1], strides = [1, 1]} : vector<4x8xi32> to vector<4x1xi32>
    %83 = vector.broadcast %82 : vector<4x1xi32> to vector<4x32xi32>
    %84 = arith.cmpi eq, %83, %69 : vector<4x32xi32>
    %85 = arith.extui %84 : vector<4x32xi1> to vector<4x32xi32>
    %86 = arith.sitofp %85 : vector<4x32xi32> to vector<4x32xf32>
    %87 = arith.addf %81, %86 : vector<4x32xf32>
    %88 = vector.extract_strided_slice %70 {offsets = [0, 3], sizes = [4, 1], strides = [1, 1]} : vector<4x8xi32> to vector<4x1xi32>
    %89 = vector.broadcast %88 : vector<4x1xi32> to vector<4x32xi32>
    %90 = arith.cmpi eq, %89, %69 : vector<4x32xi32>
    %91 = arith.extui %90 : vector<4x32xi1> to vector<4x32xi32>
    %92 = arith.sitofp %91 : vector<4x32xi32> to vector<4x32xf32>
    %93 = arith.addf %87, %92 : vector<4x32xf32>
    %94 = vector.extract_strided_slice %70 {offsets = [0, 4], sizes = [4, 1], strides = [1, 1]} : vector<4x8xi32> to vector<4x1xi32>
    %95 = vector.broadcast %94 : vector<4x1xi32> to vector<4x32xi32>
    %96 = arith.cmpi eq, %95, %69 : vector<4x32xi32>
    %97 = arith.extui %96 : vector<4x32xi1> to vector<4x32xi32>
    %98 = arith.sitofp %97 : vector<4x32xi32> to vector<4x32xf32>
    %99 = arith.addf %93, %98 : vector<4x32xf32>
    %100 = vector.extract_strided_slice %70 {offsets = [0, 5], sizes = [4, 1], strides = [1, 1]} : vector<4x8xi32> to vector<4x1xi32>
    %101 = vector.broadcast %100 : vector<4x1xi32> to vector<4x32xi32>
    %102 = arith.cmpi eq, %101, %69 : vector<4x32xi32>
    %103 = arith.extui %102 : vector<4x32xi1> to vector<4x32xi32>
    %104 = arith.sitofp %103 : vector<4x32xi32> to vector<4x32xf32>
    %105 = arith.addf %99, %104 : vector<4x32xf32>
    %106 = vector.extract_strided_slice %70 {offsets = [0, 6], sizes = [4, 1], strides = [1, 1]} : vector<4x8xi32> to vector<4x1xi32>
    %107 = vector.broadcast %106 : vector<4x1xi32> to vector<4x32xi32>
    %108 = arith.cmpi eq, %107, %69 : vector<4x32xi32>
    %109 = arith.extui %108 : vector<4x32xi1> to vector<4x32xi32>
    %110 = arith.sitofp %109 : vector<4x32xi32> to vector<4x32xf32>
    %111 = arith.addf %105, %110 : vector<4x32xf32>
    %112 = vector.extract_strided_slice %70 {offsets = [0, 7], sizes = [4, 1], strides = [1, 1]} : vector<4x8xi32> to vector<4x1xi32>
    %113 = vector.broadcast %112 : vector<4x1xi32> to vector<4x32xi32>
    %114 = arith.cmpi eq, %113, %69 : vector<4x32xi32>
    %115 = arith.extui %114 : vector<4x32xi1> to vector<4x32xi32>
    %116 = arith.sitofp %115 : vector<4x32xi32> to vector<4x32xf32>
    %117 = arith.addf %111, %116 : vector<4x32xf32>
    %c0_i32_5 = arith.constant 0 : i32
    %118 = vector.broadcast %c0_i32_5 : i32 to vector<4x32xi32>
    %119 = arith.cmpi ne, %69, %118 : vector<4x32xi32>
    %120 = arith.extui %119 : vector<4x32xi1> to vector<4x32xi32>
    %121 = arith.sitofp %120 : vector<4x32xi32> to vector<4x32xf32>
    %122 = arith.mulf %117, %121 : vector<4x32xf32>
    %c0_6 = arith.constant 0 : index
    %c160 = arith.constant 160 : index
    %123 = vector.load %arg5[%c0_6, %c160] : memref<4x192xf32, #tpu.memory_space<vmem>>, vector<4x32xf32>
    tpu.vector_store %arg5[%c0_6, %c160], %122 {strides = array<i32>} : memref<4x192xf32, #tpu.memory_space<vmem>>, vector<4x32xf32>,
    %c0_7 = arith.constant 0 : index
    %c0_8 = arith.constant 0 : index
    %124 = vector.load %arg5[%c0_7, %c0_8] : memref<4x192xf32, #tpu.memory_space<vmem>>, vector<4x192xf32>
    %125 = arith.truncf %124 : vector<4x192xf32> to vector<4x192xbf16>
    %c0_9 = arith.constant 0 : index
    %c0_10 = arith.constant 0 : index
    %126 = vector.load %arg1[%c0_9, %c0_10] : memref<192x65xbf16, #tpu.memory_space<vmem>>, vector<192x65xbf16>
    %cst = arith.constant dense<0.000000e+00> : vector<4x65xf32>
    %127 = tpu.matmul %125, %126, %cst {dimension_numbers = #tpu.dot_dimension_numbers<[1], [0], [0], [1], [0, 0, 1, 1], [], []>} : vector<4x192xbf16>, vector<192x65xbf16>, vector<4x65xf32> -> vector<4x65xf32>
    %128 = vector.extract_strided_slice %127 {offsets = [0, 64], sizes = [4, 1], strides = [1, 1]} : vector<4x65xf32> to vector<4x1xf32>
    %cst_11 = arith.constant 1.000000e-16 : f32
    %129 = vector.broadcast %cst_11 : f32 to vector<4x1xf32>
    %130 = arith.addf %128, %129 : vector<4x1xf32>
    %cst_12 = arith.constant 1.000000e+00 : f32
    %131 = vector.broadcast %cst_12 : f32 to vector<4x1xf32>
    %132 = arith.divf %131, %130 : vector<4x1xf32>
    %133 = tpu.iota {dimensions = array<i32: 1>} : vector<4x64xi32>
    %cst_13 = arith.constant 1.000000e+00 : f32
    %134 = vector.broadcast %cst_13 : f32 to vector<4x64xf32>
    %c32_i32 = arith.constant 32 : i32
    %135 = vector.broadcast %c32_i32 : i32 to vector<4x64xi32>
    %136 = arith.cmpi sge, %133, %135 : vector<4x64xi32>
    %c48_i32 = arith.constant 48 : i32
    %137 = vector.broadcast %c48_i32 : i32 to vector<4x64xi32>
    %138 = arith.cmpi slt, %133, %137 : vector<4x64xi32>
    %139 = arith.andi %136, %138 : vector<4x64xi1>
    %140 = vector.shape_cast %132 : vector<4x1xf32> to vector<4x1xf32>
    %141 = vector.broadcast %140 : vector<4x1xf32> to vector<4x64xf32>
    %142 = arith.select %139, %141, %134 : vector<4x64xi1>, vector<4x64xf32>
    %143 = vector.extract_strided_slice %127 {offsets = [0, 0], sizes = [4, 64], strides = [1, 1]} : vector<4x65xf32> to vector<4x64xf32>
    %144 = arith.mulf %143, %142 : vector<4x64xf32>
    %c0_14 = arith.constant 0 : index
    %c0_15 = arith.constant 0 : index
    %145 = vector.load %arg4[%c0_14, %c0_15] : memref<4x65xf32, #tpu.memory_space<vmem>>, vector<4x64xf32>
    tpu.vector_store %arg4[%c0_14, %c0_15], %144 {strides = array<i32>} : memref<4x65xf32, #tpu.memory_space<vmem>>, vector<4x64xf32>,
    %c0_16 = arith.constant 0 : index
    %c0_17 = arith.constant 0 : index
    %146 = vector.load %arg3[%c0_16, %c0_17] : memref<4x1xf32, #tpu.memory_space<vmem>>, vector<4x1xf32>
    %c0_18 = arith.constant 0 : index
    %c64 = arith.constant 64 : index
    %147 = vector.load %arg4[%c0_18, %c64] : memref<4x65xf32, #tpu.memory_space<vmem>>, vector<4x1xf32>
    tpu.vector_store %arg4[%c0_18, %c64], %146 {strides = array<i32>} : memref<4x65xf32, #tpu.memory_space<vmem>>, vector<4x1xf32>,
    return
  }
  func.func @transform_0(%arg0: i32) -> (i32, i32) {
    %c0_i32 = arith.constant 0 : i32
    %c0_i32_0 = arith.constant 0 : i32
    %c0_i32_1 = arith.constant 0 : i32
    return %c0_i32, %c0_i32_0 : i32, i32
  }
  func.func @transform_1(%arg0: i32) -> (i32, i32) {
    %c0_i32 = arith.constant 0 : i32
    %c0_i32_0 = arith.constant 0 : i32
    return %arg0, %c0_i32 : i32, i32
  }
  func.func @transform_2(%arg0: i32) -> (i32, i32) {
    %c0_i32 = arith.constant 0 : i32
    %c0_i32_0 = arith.constant 0 : i32
    return %arg0, %c0_i32 : i32, i32
  }
  func.func @transform_3(%arg0: i32) -> (i32, i32) {
    %c0_i32 = arith.constant 0 : i32
    %c0_i32_0 = arith.constant 0 : i32
    return %arg0, %c0_i32 : i32, i32
  }
}

</mosaic_0001>

<llo_original>
// kernel: tpu_custom_call.1
$region0: #{tpu_custom_call.1}
  #allocation0 [shape = 'u32[]', space=smem, size = 0x4, offset = 0x4, fixed_abs, tag = 'smem constant byte address 0x4 - core index']
  #allocation1 [shape = 'u32[144,128]{1,0:T(1,128)}', space=vmem, size = 0x12000, scoped, tag = 'internal scratch']
  #allocation2 [shape = 'f32[4,192]{1,0:T(4,128)}', space=vmem, size = 0x1000, scoped, tag = 'scratch operand']
  %s0 = inlined_call_operand.vmem [shape: bf16[192,65], index: 0, kind: input, shape index: {}]
  %s1 = inlined_call_operand.vmem [shape: s32[4,18], index: 1, kind: input, shape index: {}]
  %s2 = inlined_call_operand.vmem [shape: f32[4,1], index: 2, kind: input, shape index: {}]
  %s3 = inlined_call_operand.hbm [shape: f32[4,65], index: 3, kind: output, shape index: {}]
  %s4 = sld [smem:[#allocation0]]
  $region22: #{tpu_custom_call.1} parent=0
    _
  %s6 = ssub.s32 1, %s4
  %s7 = scalar_select 0, %s6, %s4
  $region1: #{tpu_custom_call.1} parent=0
    #allocation3 [shape = 'u8[2048]{0}', space=vmem, size = 0x800, scoped, tag = 'output window, operand 0, single buffered']
    #allocation4 [shape = 's32[1]{0}', space=sflag, size = 0x4, scoped, tag = 'scoped memory for tpu_custom_call.1']
    %8 = vsyncpa [#allocation4], 0
    // Predicated region
    $region2: #{tpu_custom_call.1} parent=1 // pred_check
      _
    $region3: #{tpu_custom_call.1} parent=1 // pred_check_branch
      %10 = sbr.rel (0) target = $region5
    $region4: #{tpu_custom_call.1} parent=1 // pred_region
      _
    $region5: #{tpu_custom_call.1} parent=1 // pred_fallthru
      _
    // Predicated region
    $region6: #{tpu_custom_call.1} parent=1 // pred_check
      _
    $region7: #{tpu_custom_call.1} parent=1 // pred_check_branch
      %12 = sbr.rel (0) target = $region9
    $region8: #{tpu_custom_call.1} parent=1 // pred_region
      _
    $region9: #{tpu_custom_call.1} parent=1 // pred_fallthru
      _
    // Predicated region
    $region10: #{tpu_custom_call.1} parent=1 // pred_check
      _
    $region11: #{tpu_custom_call.1} parent=1 // pred_check_branch
      %14 = sbr.rel (0) target = $region13
    $region12: #{tpu_custom_call.1} parent=1 // pred_region
      _
    $region13: #{tpu_custom_call.1} parent=1 // pred_fallthru
      _
    %v16 = vld [vmem:[%s1] sm:$0xf]
    %v17 = vlaneseq
    %v18 = vand.u32 %v17, 127
    %19 = vset.pattern.permute.xlu0 0
    %20 = vperm.xlu0 %19, %v16
    %v21 = vpop.permute.xlu0 %20
    %vm22 = vcmp.eq.s32.totalorder %v21, %v18
    %v23 = vsel %vm22, 1, 0
    %v24 = vcvt.s32.f32 %v23
    %vm25 = vcmask 257024
    %26 = vst.msk [vmem:[#allocation2] sm:$0xf] %vm25, %v24
    %27 = vset.pattern.permute.xlu0 1
    %28 = vperm.xlu0 %27, %v16
    %v29 = vpop.permute.xlu0 %28
    %vm30 = vcmp.eq.s32.totalorder %v29, %v18
    %v31 = vsel %vm30, 1, 0
    %v32 = vcvt.s32.f32 %v31
    %34 = vrot.lane.b32.xlu0 %v32, 32
    %v35 = vpop.permute.xlu0 %34
    %vm37 = vcmask 781568
    %38 = vst.msk [vmem:[#allocation2] sm:$0xf] %vm37, %v35
    %39 = vset.pattern.permute.xlu0 2
    %40 = vperm.xlu0 %39, %v16
    %v41 = vpop.permute.xlu0 %40
    %vm42 = vcmp.eq.s32.totalorder %v41, %v18
    %v43 = vsel %vm42, 1, 0
    %v44 = vcvt.s32.f32 %v43
    %45 = vset.pattern.permute.xlu0 3
    %46 = vperm.xlu0 %45, %v16
    %v47 = vpop.permute.xlu0 %46
    %vm48 = vcmp.eq.s32.totalorder %v47, %v18
    %v49 = vsel %vm48, 1, 0
    %v50 = vcvt.s32.f32 %v49
    %v51 = vadd.f32 %v44, %v50
    %52 = vset.pattern.permute.xlu0 4
    %53 = vperm.xlu0 %52, %v16
    %v54 = vpop.permute.xlu0 %53
    %vm55 = vcmp.eq.s32.totalorder %v54, %v18
    %v56 = vsel %vm55, 1, 0
    %v57 = vcvt.s32.f32 %v56
    %v58 = vadd.f32 %v51, %v57
    %59 = vset.pattern.permute.xlu0 5
    %60 = vperm.xlu0 %59, %v16
    %v61 = vpop.permute.xlu0 %60
    %vm62 = vcmp.eq.s32.totalorder %v61, %v18
    %v63 = vsel %vm62, 1, 0
    %v64 = vcvt.s32.f32 %v63
    %v65 = vadd.f32 %v58, %v64
    %66 = vset.pattern.permute.xlu0 6
    %67 = vperm.xlu0 %66, %v16
    %v68 = vpop.permute.xlu0 %67
    %vm69 = vcmp.eq.s32.totalorder %v68, %v18
    %v70 = vsel %vm69, 1, 0
    %v71 = vcvt.s32.f32 %v70
    %v72 = vadd.f32 %v65, %v71
    %73 = vset.pattern.permute.xlu0 7
    %74 = vperm.xlu0 %73, %v16
    %v75 = vpop.permute.xlu0 %74
    %vm76 = vcmp.eq.s32.totalorder %v75, %v18
    %v77 = vsel %vm76, 1, 0
    %v78 = vcvt.s32.f32 %v77
    %v79 = vadd.f32 %v72, %v78
    %80 = vset.pattern.permute.xlu0 8
    %81 = vperm.xlu0 %80, %v16
    %v82 = vpop.permute.xlu0 %81
    %vm83 = vcmp.eq.s32.totalorder %v82, %v18
    %v84 = vsel %vm83, 1, 0
    %v85 = vcvt.s32.f32 %v84
    %v86 = vadd.f32 %v79, %v85
    %87 = vset.pattern.permute.xlu0 9
    %88 = vperm.xlu0 %87, %v16
    %v89 = vpop.permute.xlu0 %88
    %vm90 = vcmp.eq.s32.totalorder %v89, %v18
    %v91 = vsel %vm90, 1, 0
    %v92 = vcvt.s32.f32 %v91
    %v93 = vadd.f32 %v86, %v92
    %vm94 = vcmp.ne.s32.totalorder %v18, 0
    %v95 = vsel %vm94, 1, 0
    %v96 = vcvt.s32.f32 %v95
    %v97 = vmul.f32 %v93, %v96
    %99 = vrot.lane.b32.xlu0 %v97, 96
    %v100 = vpop.permute.xlu0 %99
    %v101 = vrot.slane %v100, 4
    %vm102 = vcmask 785408
    %v103 = vsel %vm102, %v101, %v100
    %vm105 = vcmask 1044224
    %vm106 = vcmask 261124
    %vm107 = vmor %vm106, %vm105
    %108 = vst.msk [vmem:[#allocation2] sm:$0xff] %vm107, %v103
    %109 = vset.pattern.permute.xlu0 10
    %110 = vperm.xlu0 %109, %v16
    %v111 = vpop.permute.xlu0 %110
    %vm112 = vcmp.eq.s32.totalorder %v111, %v18
    %v113 = vsel %vm112, 1, 0
    %v114 = vcvt.s32.f32 %v113
    %115 = vset.pattern.permute.xlu0 11
    %116 = vperm.xlu0 %115, %v16
    %v117 = vpop.permute.xlu0 %116
    %vm118 = vcmp.eq.s32.totalorder %v117, %v18
    %v119 = vsel %vm118, 1, 0
    %v120 = vcvt.s32.f32 %v119
    %v121 = vadd.f32 %v114, %v120
    %122 = vset.pattern.permute.xlu0 12
    %123 = vperm.xlu0 %122, %v16
    %v124 = vpop.permute.xlu0 %123
    %vm125 = vcmp.eq.s32.totalorder %v124, %v18
    %v126 = vsel %vm125, 1, 0
    %v127 = vcvt.s32.f32 %v126
    %v128 = vadd.f32 %v121, %v127
    %129 = vset.pattern.permute.xlu0 13
    %130 = vperm.xlu0 %129, %v16
    %v131 = vpop.permute.xlu0 %130
    %vm132 = vcmp.eq.s32.totalorder %v131, %v18
    %v133 = vsel %vm132, 1, 0
    %v134 = vcvt.s32.f32 %v133
    %v135 = vadd.f32 %v128, %v134
    %136 = vset.pattern.permute.xlu0 14
    %137 = vperm.xlu0 %136, %v16
    %v138 = vpop.permute.xlu0 %137
    %vm139 = vcmp.eq.s32.totalorder %v138, %v18
    %v140 = vsel %vm139, 1, 0
    %v141 = vcvt.s32.f32 %v140
    %v142 = vadd.f32 %v135, %v141
    %143 = vset.pattern.permute.xlu0 15
    %144 = vperm.xlu0 %143, %v16
    %v145 = vpop.permute.xlu0 %144
    %vm146 = vcmp.eq.s32.totalorder %v145, %v18
    %v147 = vsel %vm146, 1, 0
    %v148 = vcvt.s32.f32 %v147
    %v149 = vadd.f32 %v142, %v148
    %150 = vset.pattern.permute.xlu0 16
    %151 = vperm.xlu0 %150, %v16
    %v152 = vpop.permute.xlu0 %151
    %vm153 = vcmp.eq.s32.totalorder %v152, %v18
    %v154 = vsel %vm153, 1, 0
    %v155 = vcvt.s32.f32 %v154
    %v156 = vadd.f32 %v149, %v155
    %157 = vset.pattern.permute.xlu0 17
    %158 = vperm.xlu0 %157, %v16
    %v159 = vpop.permute.xlu0 %158
    %vm160 = vcmp.eq.s32.totalorder %v159, %v18
    %v161 = vsel %vm160, 1, 0
    %v162 = vcvt.s32.f32 %v161
    %v163 = vadd.f32 %v156, %v162
    %v164 = vmul.f32 %v163, %v96
    %166 = vrot.lane.b32.xlu0 %v164, 32
    %v167 = vpop.permute.xlu0 %166
    %vm169 = vcmask 519424
    %170 = vst.msk [vmem:[#allocation2 + $0x4] sm:$0xf] %vm169, %v167
    %v171 = vld [vmem:[#allocation2] sm:$0xff]
    %v173 = vcombine.high %v171, %v171
    %v175 = vpack.c.bf16 %v171, %v171
    %v176 = vpack.c.bf16 %v173, %v173
    %v177 = vld [vmem:[%s0] sm:$0xf]
    %v178 = vld [vmem:[%s0 + $0x4] sm:$0xf]
    %v179 = vld [vmem:[%s0 + $0x8] sm:$0xf]
    %v180 = vld [vmem:[%s0 + $0xc] sm:$0xf]
    %v181 = vld [vmem:[%s0 + $0x10] sm:$0xf]
    %v182 = vld [vmem:[%s0 + $0x14] sm:$0xf]
    %v183 = vld [vmem:[%s0 + $0x18] sm:$0xf]
    %v184 = vld [vmem:[%s0 + $0x1c] sm:$0xf]
    %v185 = vld [vmem:[%s0 + $0x20] sm:$0xf]
    %v186 = vld [vmem:[%s0 + $0x24] sm:$0xf]
    %v187 = vld [vmem:[%s0 + $0x28] sm:$0xf]
    %v188 = vld [vmem:[%s0 + $0x2c] sm:$0xf]
    %v189 = vld [vmem:[%s0 + $0x30] sm:$0xf]
    %v190 = vld [vmem:[%s0 + $0x34] sm:$0xf]
    %v191 = vld [vmem:[%s0 + $0x38] sm:$0xf]
    %v192 = vld [vmem:[%s0 + $0x3c] sm:$0xf]
    %v193 = vld [vmem:[%s0 + $0x40] sm:$0xf]
    %v194 = vld [vmem:[%s0 + $0x44] sm:$0xf]
    %v195 = vld [vmem:[%s0 + $0x48] sm:$0xf]
    %v196 = vld [vmem:[%s0 + $0x4c] sm:$0xf]
    %v197 = vld [vmem:[%s0 + $0x50] sm:$0xf]
    %v198 = vld [vmem:[%s0 + $0x54] sm:$0xf]
    %v199 = vld [vmem:[%s0 + $0x58] sm:$0xf]
    %v200 = vld [vmem:[%s0 + $0x5c] sm:$0xf]
    %v225 = vunpack.c.l.b16 %v177
    %v226 = vunpack.c.l.b16 %v178
    %v227 = vunpack.c.l.b16 %v179
    %v228 = vunpack.c.l.b16 %v180
    %v229 = vunpack.c.l.b16 %v181
    %v230 = vunpack.c.l.b16 %v182
    %v231 = vunpack.c.l.b16 %v183
    %v232 = vunpack.c.l.b16 %v184
    %v233 = vunpack.c.l.b16 %v185
    %v234 = vunpack.c.l.b16 %v186
    %v235 = vunpack.c.l.b16 %v187
    %v236 = vunpack.c.l.b16 %v188
    %v237 = vunpack.c.l.b16 %v189
    %v238 = vunpack.c.l.b16 %v190
    %v239 = vunpack.c.l.b16 %v191
    %v240 = vunpack.c.l.b16 %v192
    %v241 = vunpack.c.l.b16 %v193
    %v242 = vunpack.c.l.b16 %v194
    %v243 = vunpack.c.l.b16 %v195
    %v244 = vunpack.c.l.b16 %v196
    %v245 = vunpack.c.l.b16 %v197
    %v246 = vunpack.c.l.b16 %v198
    %v247 = vunpack.c.l.b16 %v199
    %v248 = vunpack.c.l.b16 %v200
    %v249 = vpack.c.b16 %v226, %v225
    %v250 = vpack.c.b16 %v228, %v227
    %v251 = vpack.c.b16 %v230, %v229
    %v252 = vpack.c.b16 %v232, %v231
    %v253 = vpack.c.b16 %v234, %v233
    %v254 = vpack.c.b16 %v236, %v235
    %v255 = vpack.c.b16 %v238, %v237
    %v256 = vpack.c.b16 %v240, %v239
    %v257 = vpack.c.b16 %v242, %v241
    %v258 = vpack.c.b16 %v244, %v243
    %v259 = vpack.c.b16 %v246, %v245
    %v260 = vpack.c.b16 %v248, %v247
    %vm273 = vcmask 523264
    %v275 = vsel %vm273, %v176, 0
    %277 = vmatprep.subr.bf16.mxu0 0
    %278 = vmatpush1.bf16.msra.mxu0 %v249
    %279 = vmatprep.subr.bf16.mxu0 0
    %280 = vmatpush1.bf16.msra.mxu0 %v250
    %281 = vmatprep.subr.bf16.mxu0 0
    %282 = vmatpush1.bf16.msra.mxu0 %v251
    %283 = vmatprep.subr.bf16.mxu0 0
    %284 = vmatpush1.bf16.msra.mxu0 %v252
    %285 = vmatprep.subr.bf16.mxu0 0
    %286 = vmatpush1.bf16.msra.mxu0 %v253
    %287 = vmatprep.subr.bf16.mxu0 0
    %288 = vmatpush1.bf16.msra.mxu0 %v254
    %289 = vmatprep.subr.bf16.mxu0 0
    %290 = vmatpush1.bf16.msra.mxu0 %v255
    %291 = vmatprep.subr.bf16.mxu0 0
    %292 = vmatpush1.bf16.msra.mxu0 %v256
    %293 = vmatprep.subr.bf16.mxu0 0
    %294 = vmatpush1.bf16.msra.mxu0 %v257
    %295 = vmatprep.subr.bf16.mxu0 0
    %296 = vmatpush1.bf16.msra.mxu0 %v258
    %297 = vmatprep.subr.bf16.mxu0 0
    %298 = vmatpush1.bf16.msra.mxu0 %v259
    %299 = vmatprep.subr.bf16.mxu0 0
    %300 = vmatpush1.bf16.msra.mxu0 %v260
    %301 = vmatprep.subr.bf16.mxu0 0
    %302 = vmatpush1.bf16.msra.mxu0 0
    %303 = vmatprep.subr.bf16.mxu0 0
    %304 = vmatpush1.bf16.msra.mxu0 0
    %305 = vmatprep.subr.bf16.mxu0 0
    %306 = vmatpush1.bf16.msra.mxu0 0
    %307 = vmatprep.subr.bf16.mxu0 0
    %308 = vmatpush1.bf16.msra.mxu0 0
    %309 = vmatprep.mubr.bf16.mxu0 %v275
    %310 = vmatmul.mubr.bf16.gmra.mrb[0].mxu0 %v175
    %v311 = vpop.f32.mrb[0].mxu0
    %v312 = vadd.f32 0.0, %v311
    %v313 = vpop.f32.mrb[0].mxu0
    %v314 = vpop.f32.mrb[0].mxu0
    %v315 = vpop.f32.mrb[0].mxu0
    %316 = vdwg.mxu0
    %v317 = vadd.f32 %v312, 1e-16
    %v318 = vrcp.pop %v317
    %v319 = vmul.f32 1.0, %v318
    %vm320 = vcmp.ge.s32.totalorder %v18, 32
    %vm321 = vcmp.lt.s32.totalorder %v18, 48
    %vm322 = vmand %vm320, %vm321
    %324 = vset.pattern.permute.xlu0 64
    %325 = vperm.xlu0 %324, %v319
    %v326 = vpop.permute.xlu0 %325
    %v328 = vsel %vm322, %v326, 1.0
    %v329 = vmul.f32 %v312, %v328
    %vm330 = vcmask 519168
    %331 = vst.msk [vmem:[#allocation3] sm:$0xf] %vm330, %v329
    %v332 = vld [vmem:[%s2] sm:$0xf]
    %334 = vrot.lane.b32.xlu0 %v332, 64
    %v335 = vpop.permute.xlu0 %334
    %vm337 = vcmask 527872
    %338 = vst.msk [vmem:[#allocation3] sm:$0xf] %vm337, %v335
    // Predicated region
    $region14: #{tpu_custom_call.1} parent=1 // pred_check
      _
    $region15: #{tpu_custom_call.1} parent=1 // pred_check_branch
      %340 = sbr.rel (0) target = $region17
    $region16: #{tpu_custom_call.1} parent=1 // pred_region
      %s342 = ssub.s32 64, 64
      %343 = vsyncadd [#allocation4], %s342
      %s345 = sshll.u32 [#allocation3], 4
      %s346 = int_to_ptr.vmem [resolvable:$true] %s345
      %348 = dma.vmem_to_hbm [thread:$0]  %s346, 64, %s3, [#allocation4]
    $region17: #{tpu_custom_call.1} parent=1 // pred_fallthru
      _
    // Predicated region
    $region18: #{tpu_custom_call.1} parent=1 // pred_check
      _
    $region19: #{tpu_custom_call.1} parent=1 // pred_check_branch
      %350 = sbr.rel (0) target = $region21
    $region20: #{tpu_custom_call.1} parent=1 // pred_region
      %351 = dma.done [#allocation4], 64
    $region21: #{tpu_custom_call.1} parent=1 // pred_fallthru
      _
    %352 = vsyncpa [#allocation4], 1

</llo_original>
